<compile_context>
chip_gen: v5e
topology: v5e:2x2
jax: 0.10.0
libtpu: 0.0.40
codegen_flags: <defaults>
</compile_context>

<pallas_src>
import functools

import jax
import jax.numpy as jnp
from jax.experimental import pallas as pl
from jax.experimental.pallas import tpu as pltpu


def _round_up(v, m):
    return ((v + m - 1) // m) * m


def decoder_kernel(*refs, T, TILE_T, NB, SC, Cin):
    """One (batch, time-tile) step.

    refs (in order): [halo_ref if NB>1,] x_ref, w1_ref, b1_ref, w2f_ref, b2_ref, o_ref
      x_ref   : (TILE_T, Cin)        input rows of this tile (compute dtype)
      halo_ref: (NB-1, Cin)          last NB-1 input rows of the previous tile
      w1_ref  : (Cin, 2*Cin)         1x1 conv weight
      b1_ref  : (1, 2*Cin)           1x1 conv bias (f32)
      w2f_ref : (Cin, NB*SC)         fused transposed-conv taps, [ci, k*Cout+co]
      b2_ref  : (1, SC)              transposed-conv bias tiled over the stride phases (f32)
      o_ref   : (TILE_T, SC)         output block-rows, SC = stride*Cout
    """
    if NB > 1:
        xh_ref, x_ref, w1_ref, b1_ref, w2f_ref, b2_ref, o_ref = refs
    else:
        x_ref, w1_ref, b1_ref, w2f_ref, b2_ref, o_ref = refs
        xh_ref = None

    H = NB - 1
    TE = TILE_T + H
    j = pl.program_id(1)

    x = x_ref[...]                                               # (TILE_T, Cin)
    if H > 0:
        x_ext = jnp.concatenate([xh_ref[...], x], axis=0)        # (TE, Cin)
    else:
        x_ext = x

    # conv_a (1x1 conv == channel matmul) + GLU, f32 accumulation on the MXU.
    y1 = jnp.dot(x_ext, w1_ref[...],
                 preferred_element_type=jnp.float32) + b1_ref[...]     # (TE, 2*Cin) f32
    a = y1[:, :Cin]
    g = y1[:, Cin:]
    glu = a * jax.nn.sigmoid(g)                                  # (TE, Cin) f32

    # Zero rows outside the real input range [0, T): padded tail rows and the (zero-filled)
    # halo of tile 0 would otherwise contribute bias-driven garbage through the GLU.
    t_glob = j * TILE_T - H + jax.lax.broadcasted_iota(jnp.int32, (TE, 1), 0)
    valid = (t_glob >= 0) & (t_glob < T)
    glu = jnp.where(valid, glu, 0.0)

    # conv_b: all K taps as ONE matmul, then overlap-add with NB shifted slice-adds.
    z = jnp.dot(glu.astype(w2f_ref.dtype), w2f_ref[...],
                preferred_element_type=jnp.float32)              # (TE, NB*SC) f32

    acc = jnp.zeros((TILE_T, SC), jnp.float32)
    for k0 in range(NB):                                         # static unroll (NB small)
        acc = acc + z[H - k0:H - k0 + TILE_T, k0 * SC:(k0 + 1) * SC]
    acc = acc + b2_ref[...]

    # act = relu; single dense store of the whole tile.
    o_ref[...] = jnp.maximum(acc, 0.0)


def decoder_forward(x_nct, w1, b1, w2, b2, stride, *, tile_t=256,
                    compute_dtype=jnp.bfloat16):
    """x_nct: (B, Cin, T) PyTorch layout; returns (B, Cout, L_out) PyTorch layout."""
    B, Cin, T = x_nct.shape
    K, _, Cout = w2.shape

    NB = -(-K // stride)               # ceil(K / stride) tap-blocks
    H = NB - 1
    K_pad = NB * stride
    SC = stride * Cout
    L_out = (T - 1) * stride + K
    TB = T + H                         # output block-rows needed (TB*stride >= L_out)

    TILE_T = _round_up(min(tile_t, _round_up(TB, 8)), 8)
    nT = pl.cdiv(TB, TILE_T)
    T_pad = nT * TILE_T

    # Input: NCT -> NTC, zero-pad time to T_pad, cast MXU operands to compute dtype.
    x_ntc = jnp.transpose(x_nct, (0, 2, 1))
    x_p = jnp.pad(x_ntc, ((0, 0), (0, T_pad - T), (0, 0))).astype(compute_dtype)

    # Fused tap weights: (Cin, K_pad*Cout), w2f[ci, k*Cout + co] = w2[k, ci, co] (0 for k >= K).
    w2_kp = jnp.pad(w2, ((0, K_pad - K), (0, 0), (0, 0)))
    w2f = jnp.transpose(w2_kp, (1, 0, 2)).reshape(Cin, K_pad * Cout).astype(compute_dtype)
    w1c = w1.astype(compute_dtype)
    b1f = b1.reshape(1, 2 * Cin).astype(jnp.float32)
    b2t = jnp.tile(b2.reshape(1, Cout), (1, stride)).astype(jnp.float32)   # (1, SC)

    in_specs = []
    args = []
    if H > 0:
        # Halo: last H input rows of the previous tile (zeros for tile 0). Tiny array, lets
        # every output tile be computed independently (fully parallel grid).
        tails = x_p.reshape(B, nT, TILE_T, Cin)[:, :, TILE_T - H:, :]
        halo = jnp.concatenate(
            [jnp.zeros((B, 1, H, Cin), compute_dtype), tails[:, :nT - 1]], axis=1)
        in_specs.append(pl.BlockSpec((None, None, H, Cin), lambda b, j: (b, j, 0, 0)))
        args.append(halo)

    in_specs += [
        pl.BlockSpec((None, TILE_T, Cin), lambda b, j: (b, j, 0)),       # x tile
        pl.BlockSpec((Cin, 2 * Cin), lambda b, j: (0, 0)),               # w1 (resident)
        pl.BlockSpec((1, 2 * Cin), lambda b, j: (0, 0)),                 # b1 (resident)
        pl.BlockSpec((Cin, K_pad * Cout), lambda b, j: (0, 0)),          # w2f (resident)
        pl.BlockSpec((1, SC), lambda b, j: (0, 0)),                      # b2 tiled (resident)
    ]
    args += [x_p, w1c, b1f, w2f, b2t]

    out3 = pl.pallas_call(
        functools.partial(decoder_kernel, T=T, TILE_T=TILE_T, NB=NB, SC=SC, Cin=Cin),
        out_shape=jax.ShapeDtypeStruct((B, T_pad, SC), jnp.float32),
        grid=(B, nT),
        in_specs=in_specs,
        out_specs=pl.BlockSpec((None, TILE_T, SC), lambda b, j: (b, j, 0)),
        compiler_params=pltpu.CompilerParams(
            dimension_semantics=("parallel", "parallel"),
            vmem_limit_bytes=32 * 1024 * 1024),
    )(*args)

    # (B, T_pad, stride*Cout) -> (B, L_out, Cout) -> PyTorch (B, Cout, L_out)
    out = out3.reshape(B, T_pad * stride, Cout)[:, :L_out, :]
    return jnp.transpose(out, (0, 2, 1))


def ref_forward(x, w1, b1, w2, b2, stride):
    """Pure-JAX f32 reference with PyTorch semantics (NCT layout)."""
    B, Cin, T = x.shape
    K, _, Cout = w2.shape
    y1 = jnp.einsum("bct,cd->bdt", x, w1) + b1.reshape(1, -1, 1)
    a, g = y1[:, :Cin, :], y1[:, Cin:, :]
    glu = a * jax.nn.sigmoid(g)
    L = (T - 1) * stride + K
    out = jnp.zeros((B, Cout, L), jnp.float32) + b2.reshape(1, -1, 1)
    for k in range(K):
        zk = jnp.einsum("bct,cd->bdt", glu, w2[k])
        idx = jnp.arange(T) * stride + k
        out = out.at[:, :, idx].add(zk)
    return jnp.maximum(out, 0.0)


if __name__ == "__main__":
    # Decoder(in_channels=8, out_channels=4, kernel_size=8, stride=4, act='relu')
    B, Cin, Cout, K, stride, T = 2, 8, 4, 8, 4, 16

    key = jax.random.PRNGKey(0)
    k1, k2, k3, k4, k5 = jax.random.split(key, 5)
    w1 = jax.random.normal(k1, (Cin, 2 * Cin), jnp.float32) * 0.1   # conv_a weight (1x1)
    b1 = jax.random.normal(k2, (1, 2 * Cin), jnp.float32) * 0.1     # conv_a bias
    w2 = jax.random.normal(k3, (K, Cin, Cout), jnp.float32) * 0.1   # conv_b weight (Cin,Cout,K)->(K,Cin,Cout)
    b2 = jax.random.normal(k4, (1, Cout), jnp.float32) * 0.1        # conv_b bias
    x = jax.random.normal(k5, (B, Cin, T), jnp.float32)             # input, PyTorch NCT layout

    ref = ref_forward(x, w1, b1, w2, b2, stride)
    L_out = (T - 1) * stride + K

    # 1) f32 path, small tile (multi-tile grid, exercises the halo logic) -- exact check.
    out_f32 = decoder_forward(x, w1, b1, w2, b2, stride, tile_t=8,
                              compute_dtype=jnp.float32)
    out_f32 = jax.block_until_ready(out_f32)
    assert out_f32.shape == ref.shape == (B, Cout, L_out), (out_f32.shape, ref.shape)
    err32 = float(jnp.max(jnp.abs(out_f32 - ref)))
    assert jnp.allclose(out_f32, ref, atol=1e-4, rtol=1e-4), err32

    # 2) default bf16 MXU path (single-tile grid here) -- looser tolerance for bf16 inputs.
    out_bf16 = decoder_forward(x, w1, b1, w2, b2, stride,
                               compute_dtype=jnp.bfloat16)
    out_bf16 = jax.block_until_ready(out_bf16)
    assert out_bf16.shape == ref.shape
    errbf = float(jnp.max(jnp.abs(out_bf16 - ref)))
    assert jnp.allclose(out_bf16, ref, atol=2e-2, rtol=2e-2), errbf

    print("KERNEL_OK")
</pallas_src>

<mosaic_0001>
module attributes {stable_mosaic.version = 11 : i64} {
  func.func @decoder_kernel(%arg0: i32, %arg1: i32, %arg2: memref<1x1x1x8xf32, #tpu.memory_space<vmem>>, %arg3: memref<1x8x8xf32, #tpu.memory_space<vmem>>, %arg4: memref<8x16xf32, #tpu.memory_space<vmem>>, %arg5: memref<1x16xf32, #tpu.memory_space<vmem>>, %arg6: memref<8x32xf32, #tpu.memory_space<vmem>>, %arg7: memref<1x16xf32, #tpu.memory_space<vmem>>, %arg8: memref<1x8x16xf32, #tpu.memory_space<vmem>>) attributes {dimension_semantics = [#tpu.dimension_semantics<parallel>, #tpu.dimension_semantics<parallel>], iteration_bounds = array<i64: 2, 3>, scalar_prefetch = 0 : i64, scratch_operands = 0 : i64, tpu.core_type = #tpu.core_type<tc>, window_params = [{transform_indices = @transform_0, window_bounds = array<i64: 1, 1, 1, 8>}, {transform_indices = @transform_1, window_bounds = array<i64: 1, 8, 8>}, {pipeline_mode = #tpu.pipeline_mode<synchronous>, transform_indices = @transform_2, window_bounds = array<i64: 8, 16>}, {pipeline_mode = #tpu.pipeline_mode<synchronous>, transform_indices = @transform_3, window_bounds = array<i64: 1, 16>}, {pipeline_mode = #tpu.pipeline_mode<synchronous>, transform_indices = @transform_4, window_bounds = array<i64: 8, 32>}, {pipeline_mode = #tpu.pipeline_mode<synchronous>, transform_indices = @transform_5, window_bounds = array<i64: 1, 16>}, {transform_indices = @transform_6, window_bounds = array<i64: 1, 8, 16>}]} {
    %c0 = arith.constant 0 : index
    %c0_0 = arith.constant 0 : index
    %c0_1 = arith.constant 0 : index
    %0 = vector.load %arg3[%c0, %c0_0, %c0_1] : memref<1x8x8xf32, #tpu.memory_space<vmem>>, vector<1x8x8xf32>
    %1 = vector.shape_cast %0 : vector<1x8x8xf32> to vector<8x8xf32>
    %c0_2 = arith.constant 0 : index
    %c0_3 = arith.constant 0 : index
    %c0_4 = arith.constant 0 : index
    %c0_5 = arith.constant 0 : index
    %2 = vector.load %arg2[%c0_2, %c0_3, %c0_4, %c0_5] : memref<1x1x1x8xf32, #tpu.memory_space<vmem>>, vector<1x1x1x8xf32>
    %3 = vector.shape_cast %2 : vector<1x1x1x8xf32> to vector<1x8xf32>
    %4 = tpu.concatenate %3, %1 in 0 : vector<1x8xf32>, vector<8x8xf32> -> vector<9x8xf32>
    %c0_6 = arith.constant 0 : index
    %c0_7 = arith.constant 0 : index
    %5 = vector.load %arg4[%c0_6, %c0_7] : memref<8x16xf32, #tpu.memory_space<vmem>>, vector<8x16xf32>
    %cst = arith.constant dense<0.000000e+00> : vector<9x16xf32>
    %6 = tpu.matmul %4, %5, %cst {dimension_numbers = #tpu.dot_dimension_numbers<[1], [0], [0], [1], [0, 0, 1, 1], [], []>} : vector<9x8xf32>, vector<8x16xf32>, vector<9x16xf32> -> vector<9x16xf32>
    %c0_8 = arith.constant 0 : index
    %c0_9 = arith.constant 0 : index
    %7 = vector.load %arg5[%c0_8, %c0_9] : memref<1x16xf32, #tpu.memory_space<vmem>>, vector<1x16xf32>
    %8 = vector.broadcast %7 : vector<1x16xf32> to vector<9x16xf32>
    %9 = arith.addf %6, %8 : vector<9x16xf32>
    %10 = vector.extract_strided_slice %9 {offsets = [0, 0], sizes = [9, 8], strides = [1, 1]} : vector<9x16xf32> to vector<9x8xf32>
    %11 = vector.extract_strided_slice %9 {offsets = [0, 8], sizes = [9, 8], strides = [1, 1]} : vector<9x16xf32> to vector<9x8xf32>
    %12 = arith.negf %11 : vector<9x8xf32>
    %13 = math.exp %12 : vector<9x8xf32>
    %cst_10 = arith.constant 1.000000e+00 : f32
    %14 = vector.broadcast %cst_10 : f32 to vector<9x8xf32>
    %15 = arith.addf %14, %13 : vector<9x8xf32>
    %16 = arith.divf %14, %15 : vector<9x8xf32>
    %17 = arith.mulf %10, %16 : vector<9x8xf32>
    %c8_i32 = arith.constant 8 : i32
    %18 = arith.muli %arg1, %c8_i32 : i32
    %c1_i32 = arith.constant 1 : i32
    %19 = arith.subi %18, %c1_i32 : i32
    %20 = tpu.iota {dimensions = array<i32: 0>} : vector<9x1xi32>
    %21 = vector.broadcast %19 : i32 to vector<9x1xi32>
    %22 = arith.addi %21, %20 : vector<9x1xi32>
    %c0_i32 = arith.constant 0 : i32
    %23 = vector.broadcast %c0_i32 : i32 to vector<9x1xi32>
    %24 = arith.cmpi sge, %22, %23 : vector<9x1xi32>
    %c16_i32 = arith.constant 16 : i32
    %25 = vector.broadcast %c16_i32 : i32 to vector<9x1xi32>
    %26 = arith.cmpi slt, %22, %25 : vector<9x1xi32>
    %27 = arith.andi %24, %26 : vector<9x1xi1>
    %cst_11 = arith.constant 0.000000e+00 : f32
    %28 = vector.shape_cast %27 : vector<9x1xi1> to vector<9x1xi1>
    %29 = vector.broadcast %28 : vector<9x1xi1> to vector<9x8xi1>
    %30 = vector.broadcast %cst_11 : f32 to vector<9x8xf32>
    %31 = arith.select %29, %17, %30 : vector<9x8xi1>, vector<9x8xf32>
    %c0_12 = arith.constant 0 : index
    %c0_13 = arith.constant 0 : index
    %32 = vector.load %arg6[%c0_12, %c0_13] : memref<8x32xf32, #tpu.memory_space<vmem>>, vector<8x32xf32>
    %cst_14 = arith.constant dense<0.000000e+00> : vector<9x32xf32>
    %33 = tpu.matmul %31, %32, %cst_14 {dimension_numbers = #tpu.dot_dimension_numbers<[1], [0], [0], [1], [0, 0, 1, 1], [], []>} : vector<9x8xf32>, vector<8x32xf32>, vector<9x32xf32> -> vector<9x32xf32>
    %cst_15 = arith.constant 0.000000e+00 : f32
    %34 = vector.broadcast %cst_15 : f32 to vector<8x16xf32>
    %35 = vector.extract_strided_slice %33 {offsets = [1, 0], sizes = [8, 16], strides = [1, 1]} : vector<9x32xf32> to vector<8x16xf32>
    %36 = arith.addf %34, %35 : vector<8x16xf32>
    %37 = vector.extract_strided_slice %33 {offsets = [0, 16], sizes = [8, 16], strides = [1, 1]} : vector<9x32xf32> to vector<8x16xf32>
    %38 = arith.addf %36, %37 : vector<8x16xf32>
    %c0_16 = arith.constant 0 : index
    %c0_17 = arith.constant 0 : index
    %39 = vector.load %arg7[%c0_16, %c0_17] : memref<1x16xf32, #tpu.memory_space<vmem>>, vector<1x16xf32>
    %40 = vector.broadcast %39 : vector<1x16xf32> to vector<8x16xf32>
    %41 = arith.addf %38, %40 : vector<8x16xf32>
    %cst_18 = arith.constant 0.000000e+00 : f32
    %42 = vector.broadcast %cst_18 : f32 to vector<8x16xf32>
    %43 = arith.maximumf %41, %42 : vector<8x16xf32>
    %c0_19 = arith.constant 0 : index
    %c0_20 = arith.constant 0 : index
    %c0_21 = arith.constant 0 : index
    %44 = vector.load %arg8[%c0_19, %c0_20, %c0_21] : memref<1x8x16xf32, #tpu.memory_space<vmem>>, vector<1x8x16xf32>
    %45 = vector.shape_cast %44 : vector<1x8x16xf32> to vector<8x16xf32>
    %46 = vector.shape_cast %43 : vector<8x16xf32> to vector<1x8x16xf32>
    tpu.vector_store %arg8[%c0_19, %c0_20, %c0_21], %46 {strides = array<i32>} : memref<1x8x16xf32, #tpu.memory_space<vmem>>, vector<1x8x16xf32>,
    return
  }
  func.func @transform_0(%arg0: i32, %arg1: i32) -> (i32, i32, i32, i32) {
    %c0_i32 = arith.constant 0 : i32
    %c0_i32_0 = arith.constant 0 : i32
    %c0_i32_1 = arith.constant 0 : i32
    return %arg0, %arg1, %c0_i32, %c0_i32_0 : i32, i32, i32, i32
  }
  func.func @transform_1(%arg0: i32, %arg1: i32) -> (i32, i32, i32) {
    %c0_i32 = arith.constant 0 : i32
    %c0_i32_0 = arith.constant 0 : i32
    return %arg0, %arg1, %c0_i32 : i32, i32, i32
  }
  func.func @transform_2(%arg0: i32, %arg1: i32) -> (i32, i32) {
    %c0_i32 = arith.constant 0 : i32
    %c0_i32_0 = arith.constant 0 : i32
    %c0_i32_1 = arith.constant 0 : i32
    return %c0_i32, %c0_i32_0 : i32, i32
  }
  func.func @transform_3(%arg0: i32, %arg1: i32) -> (i32, i32) {
    %c0_i32 = arith.constant 0 : i32
    %c0_i32_0 = arith.constant 0 : i32
    %c0_i32_1 = arith.constant 0 : i32
    return %c0_i32, %c0_i32_0 : i32, i32
  }
  func.func @transform_4(%arg0: i32, %arg1: i32) -> (i32, i32) {
    %c0_i32 = arith.constant 0 : i32
    %c0_i32_0 = arith.constant 0 : i32
    %c0_i32_1 = arith.constant 0 : i32
    return %c0_i32, %c0_i32_0 : i32, i32
  }
  func.func @transform_5(%arg0: i32, %arg1: i32) -> (i32, i32) {
    %c0_i32 = arith.constant 0 : i32
    %c0_i32_0 = arith.constant 0 : i32
    %c0_i32_1 = arith.constant 0 : i32
    return %c0_i32, %c0_i32_0 : i32, i32
  }
  func.func @transform_6(%arg0: i32, %arg1: i32) -> (i32, i32, i32) {
    %c0_i32 = arith.constant 0 : i32
    %c0_i32_0 = arith.constant 0 : i32
    return %arg0, %arg1, %c0_i32 : i32, i32, i32
  }
}

</mosaic_0001>

<llo_original>
// kernel: tpu_custom_call.1
$region0: #{tpu_custom_call.1}
  #allocation0 [shape = 'u32[]', space=smem, size = 0x4, offset = 0x4, fixed_abs, tag = 'smem constant byte address 0x4 - core index']
  #allocation1 [shape = 'u32[72,128]{1,0:T(1,128)}', space=vmem, size = 0x9000, scoped, tag = 'internal scratch']
  %s0 = inlined_call_operand.vmem [shape: f32[2,3,1,8], index: 0, kind: input, shape index: {}]
  %s1 = inlined_call_operand.vmem [shape: f32[2,24,8], index: 1, kind: input, shape index: {}]
  %s2 = inlined_call_operand.vmem [shape: f32[8,16], index: 2, kind: input, shape index: {}]
  %s3 = inlined_call_operand.vmem [shape: f32[1,16], index: 3, kind: input, shape index: {}]
  %s4 = inlined_call_operand.vmem [shape: f32[8,32], index: 4, kind: input, shape index: {}]
  %s5 = inlined_call_operand.vmem [shape: f32[1,16], index: 5, kind: input, shape index: {}]
  %s6 = inlined_call_operand.vmem [shape: f32[2,24,16], index: 6, kind: output, shape index: {}]
  %s7 = sld [smem:[#allocation0]]
  $region57: #{tpu_custom_call.1} parent=0
    _
  %s9 = ssub.s32 1, %s7
  %s10 = scalar_select 0, %s9, %s7
  loop: start=0, step=1, limit=8
  $region2: #{tpu_custom_call.1} parent=0 // loop_pre_header
    _
  $region3: #{tpu_custom_call.1} parent=0 // loop_header
    %s12 = sphi 0, %s16
    %p13 = scmp.ge.s32.totalorder %s12, 8
    %s19 = sphi 0, %s31
    %s20 = sphi 0, %s27
    %s21 = sphi 0, %s19
    %s22 = sphi 0, %s20
    %s23 = sphi 0, %s21
    %s24 = sphi 0, %s22
    %s36 = sphi 0, %s38
    %s39 = sphi 0, %s36
    %s40 = sphi 0, %s39
    %s56 = sphi 0, %s40
    %s64 = sphi 0, %s66
    %s67 = sphi 0, %s64
    %s68 = sphi 0, %s67
    %s84 = sphi 0, %s68
    %s88 = sphi 0, %s88
    %s90 = sphi 0, %s88
    %s91 = sphi 0, %s90
    %s105 = sphi 0, %s91
    %s109 = sphi 0, %s109
    %s111 = sphi 0, %s109
    %s112 = sphi 0, %s111
    %s126 = sphi 0, %s112
    %s130 = sphi 0, %s130
    %s132 = sphi 0, %s130
    %s133 = sphi 0, %s132
    %s147 = sphi 0, %s133
    %s151 = sphi 0, %s151
    %s153 = sphi 0, %s151
    %s154 = sphi 0, %s153
    %s168 = sphi 0, %s154
    %s176 = sphi 0, %s178
    %s179 = sphi 0, %s176
    %s180 = sphi 0, %s179
    %s196 = sphi 0, %s180
  $region4: #{tpu_custom_call.1} parent=0 // loop_header_branch
    %15 = sbr.rel (%p13) target = $region8
  $region5: #{tpu_custom_call.1} parent=0 // loop_body
    %s17 = ssub.s32 %s12, 1
    %s18 = ssub.s32 %s12, 2
    %s25 = sadd.s32 1, %s20
    %p26 = scmp.ge.s32.totalorder %s25, 3
    %s27 = scalar_select %p26, 0, %s25
    %s28 = sadd.s32 1, %s19
    %s29 = scalar_select %p26, %s28, %s19
    %p30 = scmp.ge.s32.totalorder %s29, 2
    %s31 = scalar_select %p30, 0, %s29
    %s32 = ssub.s32 %s19, %s31
    %s33 = ssub.s32 %s20, %s27
    %s34 = sor.u32 %s32, %s33
    %p35 = scmp.eq.s32.totalorder %s34, 0
    %s37 = sadd.s32 %s36, 1
    %s38 = scalar_select %p35, %s36, %s37
    %p41 = pneg %p35
    %p42 = scmp.eq.s32.totalorder %s12, 5
    %p43 = por %p41, %p42
    %p44 = scmp.ne.s32.totalorder %s36, %s39
    %p45 = scmp.eq.s32.totalorder %s12, 0
    %p46 = por %p44, %p45
    %p47 = scmp.ne.s32.totalorder %s36, %s39
    %p48 = scmp.eq.s32.totalorder %s17, 5
    %p49 = por %p47, %p48
    %p50 = scmp.ne.s32.totalorder %s39, %s40
    %p51 = scmp.eq.s32.totalorder %s17, 0
    %p52 = por %p50, %p51
    %p53 = scmp.ne.s32.totalorder %s39, %s40
    %p54 = scmp.eq.s32.totalorder %s18, 5
    %p55 = por %p53, %p54
    %p57 = scmp.ne.s32.totalorder %s40, %s56
    %p58 = scmp.eq.s32.totalorder %s18, 0
    %p59 = por %p57, %p58
    %s60 = ssub.s32 %s19, %s31
    %s61 = ssub.s32 %s20, %s27
    %s62 = sor.u32 %s60, %s61
    %p63 = scmp.eq.s32.totalorder %s62, 0
    %s65 = sadd.s32 %s64, 1
    %s66 = scalar_select %p63, %s64, %s65
    %p69 = pneg %p63
    %p70 = scmp.eq.s32.totalorder %s12, 5
    %p71 = por %p69, %p70
    %p72 = scmp.ne.s32.totalorder %s64, %s67
    %p73 = scmp.eq.s32.totalorder %s12, 0
    %p74 = por %p72, %p73
    %p75 = scmp.ne.s32.totalorder %s64, %s67
    %p76 = scmp.eq.s32.totalorder %s17, 5
    %p77 = por %p75, %p76
    %p78 = scmp.ne.s32.totalorder %s67, %s68
    %p79 = scmp.eq.s32.totalorder %s17, 0
    %p80 = por %p78, %p79
    %p81 = scmp.ne.s32.totalorder %s67, %s68
    %p82 = scmp.eq.s32.totalorder %s18, 5
    %p83 = por %p81, %p82
    %p85 = scmp.ne.s32.totalorder %s68, %s84
    %p86 = scmp.eq.s32.totalorder %s18, 0
    %p87 = por %p85, %p86
    %s89 = sadd.s32 %s88, 1
    %p92 = scmp.eq.s32.totalorder %s12, 5
    %p93 = scmp.ne.s32.totalorder %s88, %s90
    %p94 = scmp.eq.s32.totalorder %s12, 0
    %p95 = por %p93, %p94
    %p96 = scmp.ne.s32.totalorder %s88, %s90
    %p97 = scmp.eq.s32.totalorder %s17, 5
    %p98 = por %p96, %p97
    %p99 = scmp.ne.s32.totalorder %s90, %s91
    %p100 = scmp.eq.s32.totalorder %s17, 0
    %p101 = por %p99, %p100
    %p102 = scmp.ne.s32.totalorder %s90, %s91
    %p103 = scmp.eq.s32.totalorder %s18, 5
    %p104 = por %p102, %p103
    %p106 = scmp.ne.s32.totalorder %s91, %s105
    %p107 = scmp.eq.s32.totalorder %s18, 0
    %p108 = por %p106, %p107
    %s110 = sadd.s32 %s109, 1
    %p113 = scmp.eq.s32.totalorder %s12, 5
    %p114 = scmp.ne.s32.totalorder %s109, %s111
    %p115 = scmp.eq.s32.totalorder %s12, 0
    %p116 = por %p114, %p115
    %p117 = scmp.ne.s32.totalorder %s109, %s111
    %p118 = scmp.eq.s32.totalorder %s17, 5
    %p119 = por %p117, %p118
    %p120 = scmp.ne.s32.totalorder %s111, %s112
    %p121 = scmp.eq.s32.totalorder %s17, 0
    %p122 = por %p120, %p121
    %p123 = scmp.ne.s32.totalorder %s111, %s112
    %p124 = scmp.eq.s32.totalorder %s18, 5
    %p125 = por %p123, %p124
    %p127 = scmp.ne.s32.totalorder %s112, %s126
    %p128 = scmp.eq.s32.totalorder %s18, 0
    %p129 = por %p127, %p128
    %s131 = sadd.s32 %s130, 1
    %p134 = scmp.eq.s32.totalorder %s12, 5
    %p135 = scmp.ne.s32.totalorder %s130, %s132
    %p136 = scmp.eq.s32.totalorder %s12, 0
    %p137 = por %p135, %p136
    %p138 = scmp.ne.s32.totalorder %s130, %s132
    %p139 = scmp.eq.s32.totalorder %s17, 5
    %p140 = por %p138, %p139
    %p141 = scmp.ne.s32.totalorder %s132, %s133
    %p142 = scmp.eq.s32.totalorder %s17, 0
    %p143 = por %p141, %p142
    %p144 = scmp.ne.s32.totalorder %s132, %s133
    %p145 = scmp.eq.s32.totalorder %s18, 5
    %p146 = por %p144, %p145
    %p148 = scmp.ne.s32.totalorder %s133, %s147
    %p149 = scmp.eq.s32.totalorder %s18, 0
    %p150 = por %p148, %p149
    %s152 = sadd.s32 %s151, 1
    %p155 = scmp.eq.s32.totalorder %s12, 5
    %p156 = scmp.ne.s32.totalorder %s151, %s153
    %p157 = scmp.eq.s32.totalorder %s12, 0
    %p158 = por %p156, %p157
    %p159 = scmp.ne.s32.totalorder %s151, %s153
    %p160 = scmp.eq.s32.totalorder %s17, 5
    %p161 = por %p159, %p160
    %p162 = scmp.ne.s32.totalorder %s153, %s154
    %p163 = scmp.eq.s32.totalorder %s17, 0
    %p164 = por %p162, %p163
    %p165 = scmp.ne.s32.totalorder %s153, %s154
    %p166 = scmp.eq.s32.totalorder %s18, 5
    %p167 = por %p165, %p166
    %p169 = scmp.ne.s32.totalorder %s154, %s168
    %p170 = scmp.eq.s32.totalorder %s18, 0
    %p171 = por %p169, %p170
    %s172 = ssub.s32 %s19, %s31
    %s173 = ssub.s32 %s20, %s27
    %s174 = sor.u32 %s172, %s173
    %p175 = scmp.eq.s32.totalorder %s174, 0
    %s177 = sadd.s32 %s176, 1
    %s178 = scalar_select %p175, %s176, %s177
    %p181 = pneg %p175
    %p182 = scmp.eq.s32.totalorder %s12, 5
    %p183 = por %p181, %p182
    %p184 = scmp.ne.s32.totalorder %s176, %s179
    %p185 = scmp.eq.s32.totalorder %s12, 0
    %p186 = por %p184, %p185
    %p187 = scmp.ne.s32.totalorder %s176, %s179
    %p188 = scmp.eq.s32.totalorder %s17, 5
    %p189 = por %p187, %p188
    %p190 = scmp.ne.s32.totalorder %s179, %s180
    %p191 = scmp.eq.s32.totalorder %s17, 0
    %p192 = por %p190, %p191
    %p193 = scmp.ne.s32.totalorder %s179, %s180
    %p194 = scmp.eq.s32.totalorder %s18, 5
    %p195 = por %p193, %p194
    %p197 = scmp.ne.s32.totalorder %s180, %s196
    %p198 = scmp.eq.s32.totalorder %s18, 0
    %p199 = por %p197, %p198
    %p200 = scmp.le.s32.totalorder 1, %s12
    %p201 = scmp.lt.s32.totalorder %s12, 7
    %p202 = pnand %p200, %p201
    %p203 = pneg %p202
    // Predicated region
    $region9: #{tpu_custom_call.1} parent=5 // pred_check
      _
    $region10: #{tpu_custom_call.1} parent=5 // pred_check_branch
      %205 = sbr.rel (%p202) target = $region12
    $region11: #{tpu_custom_call.1} parent=5 // pred_region
      %s206 = ssub.s32 %s12, 1
      // Predicated region
      $region13: #{tpu_custom_call.1} parent=11 // pred_check
        %p207 = pneg %p101
      $region14: #{tpu_custom_call.1} parent=11 // pred_check_branch
        %209 = sbr.rel (%p207) target = $region16
      $region15: #{tpu_custom_call.1} parent=11 // pred_region
        _
      $region16: #{tpu_custom_call.1} parent=11 // pred_fallthru
        _
      // Predicated region
      $region17: #{tpu_custom_call.1} parent=11 // pred_check
        %p210 = pneg %p122
      $region18: #{tpu_custom_call.1} parent=11 // pred_check_branch
        %212 = sbr.rel (%p210) target = $region20
      $region19: #{tpu_custom_call.1} parent=11 // pred_region
        _
      $region20: #{tpu_custom_call.1} parent=11 // pred_fallthru
        _
      // Predicated region
      $region21: #{tpu_custom_call.1} parent=11 // pred_check
        %p213 = pneg %p143
      $region22: #{tpu_custom_call.1} parent=11 // pred_check_branch
        %215 = sbr.rel (%p213) target = $region24
      $region23: #{tpu_custom_call.1} parent=11 // pred_region
        _
      $region24: #{tpu_custom_call.1} parent=11 // pred_fallthru
        _
      // Predicated region
      $region25: #{tpu_custom_call.1} parent=11 // pred_check
        %p216 = pneg %p164
      $region26: #{tpu_custom_call.1} parent=11 // pred_check_branch
        %218 = sbr.rel (%p216) target = $region28
      $region27: #{tpu_custom_call.1} parent=11 // pred_region
        _
      $region28: #{tpu_custom_call.1} parent=11 // pred_fallthru
        _
    $region12: #{tpu_custom_call.1} parent=5 // pred_fallthru
      _
    %p219 = scmp.lt.s32.totalorder %s12, 6
    // Predicated region
    $region29: #{tpu_custom_call.1} parent=5 // pred_check
      %p220 = pneg %p219
    $region30: #{tpu_custom_call.1} parent=5 // pred_check_branch
      %222 = sbr.rel (%p220) target = $region32
    $region31: #{tpu_custom_call.1} parent=5 // pred_region
      // Predicated region
      $region33: #{tpu_custom_call.1} parent=31 // pred_check
        %p223 = pneg %p46
      $region34: #{tpu_custom_call.1} parent=31 // pred_check_branch
        %225 = sbr.rel (%p223) target = $region36
      $region35: #{tpu_custom_call.1} parent=31 // pred_region
        %p226 = scmp.lt.s32.totalorder %s19, 1
        %s227 = scalar_select %p226, %s19, 1
        %p228 = scmp.lt.s32.totalorder %s20, 2
        %s229 = scalar_select %p228, %s20, 2
        %s230 = smul.addr %s227, 3
        %s231 = sadd.s32 %s229, %s230
        %s232 = scalar_lea.vmem %s0, %s231
      $region36: #{tpu_custom_call.1} parent=31 // pred_fallthru
        _
      // Predicated region
      $region37: #{tpu_custom_call.1} parent=31 // pred_check
        %p233 = pneg %p74
      $region38: #{tpu_custom_call.1} parent=31 // pred_check_branch
        %235 = sbr.rel (%p233) target = $region40
      $region39: #{tpu_custom_call.1} parent=31 // pred_region
        %p236 = scmp.lt.s32.totalorder %s19, 1
        %s237 = scalar_select %p236, %s19, 1
        %p238 = scmp.lt.s32.totalorder %s20, 2
        %s239 = scalar_select %p238, %s20, 2
        %s240 = smul.addr %s237, 3
        %s241 = sadd.s32 %s239, %s240
        %s242 = smul.addr %s241, 8
        %s243 = scalar_lea.vmem %s1, %s242
      $region40: #{tpu_custom_call.1} parent=31 // pred_fallthru
        _
    $region32: #{tpu_custom_call.1} parent=5 // pred_fallthru
      _
    %p244 = scmp.le.s32.totalorder 1, %s12
    %p245 = scmp.lt.s32.totalorder %s12, 7
    %p246 = pnand %p244, %p245
    %p247 = pneg %p246
    // Predicated region
    $region41: #{tpu_custom_call.1} parent=5 // pred_check
      _
    $region42: #{tpu_custom_call.1} parent=5 // pred_check_branch
      %249 = sbr.rel (%p246) target = $region44
    $region43: #{tpu_custom_call.1} parent=5 // pred_region
      %s250 = ssub.s32 %s12, 1
      %p251 = scmp.lt.s32.totalorder %s21, 1
      %s252 = scalar_select %p251, %s21, 1
      %p253 = scmp.lt.s32.totalorder %s22, 2
      %s254 = scalar_select %p253, %s22, 2
      %s255 = smul.addr %s252, 3
      %s256 = sadd.s32 %s254, %s255
      %s257 = scalar_lea.vmem %s0, %s256
      %p258 = pneg %p52
      %p259 = pneg %p49
      %p260 = scmp.lt.s32.totalorder %s21, 1
      %s261 = scalar_select %p260, %s21, 1
      %p262 = scmp.lt.s32.totalorder %s22, 2
      %s263 = scalar_select %p262, %s22, 2
      %s264 = smul.addr %s261, 3
      %s265 = sadd.s32 %s263, %s264
      %s266 = smul.addr %s265, 8
      %s267 = scalar_lea.vmem %s1, %s266
      %p268 = pneg %p80
      %p269 = pneg %p77
      %p270 = pneg %p101
      %p271 = pneg %p98
      %p272 = pneg %p122
      %p273 = pneg %p119
      %p274 = pneg %p143
      %p275 = pneg %p140
      %p276 = pneg %p164
      %p277 = pneg %p161
      %p278 = pneg %p192
      %p279 = pneg %p189
      %p280 = scmp.lt.s32.totalorder %s21, 1
      %s281 = scalar_select %p280, %s21, 1
      %p282 = scmp.lt.s32.totalorder %s22, 2
      %s283 = scalar_select %p282, %s22, 2
      %s284 = smul.addr %s281, 3
      %s285 = sadd.s32 %s283, %s284
      %s286 = smul.addr %s285, 8
      %s287 = scalar_lea.vmem %s6, %s286
      %p288 = scmp.lt.s32.totalorder %s21, 1
      %s289 = scalar_select %p288, %s21, 1
      %p290 = scmp.lt.s32.totalorder %s22, 2
      %s291 = scalar_select %p290, %s22, 2
      %s292 = smul.addr %s289, 3
      %s293 = sadd.s32 %s291, %s292
      %s294 = scalar_lea.vmem %s0, %s293
      %p295 = scmp.lt.s32.totalorder %s21, 1
      %s296 = scalar_select %p295, %s21, 1
      %p297 = scmp.lt.s32.totalorder %s22, 2
      %s298 = scalar_select %p297, %s22, 2
      %s299 = smul.addr %s296, 3
      %s300 = sadd.s32 %s298, %s299
      %s301 = smul.addr %s300, 8
      %s302 = scalar_lea.vmem %s1, %s301
      %p303 = scmp.lt.s32.totalorder %s21, 1
      %s304 = scalar_select %p303, %s21, 1
      %p305 = scmp.lt.s32.totalorder %s22, 2
      %s306 = scalar_select %p305, %s22, 2
      %s307 = smul.addr %s304, 3
      %s308 = sadd.s32 %s306, %s307
      %s309 = smul.addr %s308, 8
      %s310 = scalar_lea.vmem %s6, %s309
      %v311 = vld [vmem:[%s302] sm:$0xff]
      %v312 = vld [vmem:[%s294] sm:$0x1]
      %v314 = vrot.slane %v311, 7
      %vm316 = vcmask 1040384
      %v317 = vsel %vm316, %v312, %v314
      %v318 = vld [vmem:[%s2] sm:$0xff]
      %v319 = vld [vmem:[%s3] sm:$0x1]
      %v321 = vperm.slane %v319, 0
      %vm323 = vcmask 64512
      %v325 = vsel %vm323, %v317, 0
      %v327 = vsel %vm323, %v314, 0
      %329 = vmatpush.msra.mxu0 0.0
      %330 = vmatpush.msra.mxu0 0.0
      %331 = vmatpush.msra.mxu0 0.0
      %332 = vmatpush.msra.mxu0 0.0
      %333 = vmatpush.msra.mxu0 0.0
      %334 = vmatpush.msra.mxu0 0.0
      %335 = vmatpush.msra.mxu0 0.0
      %336 = vmatpush.msra.mxu0 0.0
      %337 = vmatpush.msra.mxu0 0.0
      %338 = vmatpush.msra.mxu0 0.0
      %339 = vmatpush.msra.mxu0 0.0
      %340 = vmatpush.msra.mxu0 0.0
      %341 = vmatpush.msra.mxu0 0.0
      %342 = vmatpush.msra.mxu0 0.0
      %343 = vmatpush.msra.mxu0 0.0
      %344 = vmatpush.msra.mxu0 %v318
      %345 = vmatmul.f32.gmra.mxu0 %v325
      %v346 = vpop.f32.mrf.mxu0
      %v347 = vadd.f32 %v321, %v346
      %348 = vmatmul.f32.gmra.mxu0 %v327
      %v349 = vpop.f32.mrf.mxu0
      %v350 = vadd.f32 %v321, %v349
      %351 = vdwg.mxu0
      %v352 = vxor.u32 %v347, 2147483648
      %v353 = vxor.u32 %v350, 2147483648
      %v354 = vmul.f32 %v352, 1.442695
      %v355 = vpow.pop %v354
      %v356 = vmul.f32 %v353, 1.442695
      %v357 = vpow.pop %v356
      %v358 = vadd.f32 %v355, 1.0
      %v359 = vadd.f32 %v357, 1.0
      %v360 = vrcp.pop %v358
      %v361 = vmul.f32 %v358, %v360
      %v362 = vsub.f32 1.0, %v361
      %v363 = vmul.f32 %v360, %v362
      %v364 = vadd.f32 %v360, %v363
      %vm365 = vweird.f32 %v358
      %vm366 = vweird.f32 %v360
      %vm367 = vmor %vm365, %vm366
      %v368 = vsel %vm367, %v360, %v364
      %v369 = vand.u32 2147483647, %v358
      %vm370 = vcmp.eq.f32.partialorder %v369, 8.507059e+37
      %v371 = vand.u32 %v358, 2147483648
      %v372 = vor.u32 1.1754944e-38, %v371
      %v373 = vsel %vm370, %v372, %v368
      %v374 = vmul.f32 1.0, %v373
      %v375 = vrcp.pop %v359
      %v376 = vmul.f32 %v359, %v375
      %v377 = vsub.f32 1.0, %v376
      %v378 = vmul.f32 %v375, %v377
      %v379 = vadd.f32 %v375, %v378
      %vm380 = vweird.f32 %v359
      %vm381 = vweird.f32 %v375
      %vm382 = vmor %vm380, %vm381
      %v383 = vsel %vm382, %v375, %v379
      %v384 = vand.u32 2147483647, %v359
      %vm385 = vcmp.eq.f32.partialorder %v384, 8.507059e+37
      %v386 = vand.u32 %v359, 2147483648
      %v387 = vor.u32 1.1754944e-38, %v386
      %v388 = vsel %vm385, %v387, %v383
      %v389 = vmul.f32 1.0, %v388
      %392 = vrot.lane.b32.xlu0 %v374, 120
      %v393 = vpop.permute.xlu0 %392
      %394 = vrot.lane.b32.xlu0 %v389, 120
      %v395 = vpop.permute.xlu0 %394
      %v398 = vmul.f32 %v347, %v393
      %v399 = vmul.f32 %v350, %v395
      %s400 = smul.u32 %s22, 8
      %s401 = ssub.s32 %s400, 1
      %v402 = vlaneseq
      %v403 = vshrl.u32 %v402, 7
      %v404 = vadd.s32 %v403, 8
      %v405 = vstv %s401
      %v406 = vadd.s32 %v405, %v403
      %v407 = vadd.s32 %v405, %v404
      %vm408 = vcmp.ge.s32.totalorder %v406, 0
      %vm409 = vcmp.ge.s32.totalorder %v407, 0
      %vm410 = vcmp.lt.s32.totalorder %v406, 16
      %vm411 = vcmp.lt.s32.totalorder %v407, 16
      %vm412 = vmand %vm408, %vm410
      %vm413 = vmand %vm409, %vm411
      %v414 = vsel %vm412, 1, 0
      %v415 = vsel %vm413, 1, 0
      %vm416 = vcmp.eq.s32.totalorder %v414, 1
      %vm417 = vcmp.eq.s32.totalorder %v415, 1
      %v418 = vsel %vm416, %v398, 0.0
      %v419 = vsel %vm417, %v399, 0.0
      %v420 = vld [vmem:[%s4] sm:$0xff]
      %v422 = vsel %vm323, %v418, 0
      %v425 = vsel %vm323, %v419, 0
      %427 = vmatpush.msra.mxu0 0.0
      %428 = vmatpush.msra.mxu0 0.0
      %429 = vmatpush.msra.mxu0 0.0
      %430 = vmatpush.msra.mxu0 0.0
      %431 = vmatpush.msra.mxu0 0.0
      %432 = vmatpush.msra.mxu0 0.0
      %433 = vmatpush.msra.mxu0 0.0
      %434 = vmatpush.msra.mxu0 0.0
      %435 = vmatpush.msra.mxu0 0.0
      %436 = vmatpush.msra.mxu0 0.0
      %437 = vmatpush.msra.mxu0 0.0
      %438 = vmatpush.msra.mxu0 0.0
      %439 = vmatpush.msra.mxu0 0.0
      %440 = vmatpush.msra.mxu0 0.0
      %441 = vmatpush.msra.mxu0 0.0
      %442 = vmatpush.msra.mxu0 %v420
      %443 = vmatmul.f32.gmra.mxu0 %v422
      %v444 = vpop.f32.mrf.mxu0
      %v445 = vadd.f32 0.0, %v444
      %446 = vmatmul.f32.gmra.mxu0 %v425
      %v447 = vpop.f32.mrf.mxu0
      %v448 = vadd.f32 0.0, %v447
      %449 = vdwg.mxu0
      %v450 = vadd.f32 %v445, 0.0
      %v451 = vadd.f32 %v448, 0.0
      %v453 = vrot.slane %v445, 7
      %454 = vrot.lane.b32.xlu0 %v453, 112
      %v455 = vpop.permute.xlu0 %454
      %v457 = vadd.f32 %v450, %v455
      %v458 = vadd.f32 %v451, %v455
      %v459 = vld [vmem:[%s5] sm:$0x1]
      %v461 = vperm.slane %v459, 0
      %v463 = vadd.f32 %v457, %v461
      %v464 = vadd.f32 %v458, %v461
      %v465 = vmax.f32 %v463, 0.0
      %v466 = vmax.f32 %v464, 0.0
      %vm467 = vcmask 130049
      %468 = vst.msk [vmem:[%s310 - $0x1] sm:$0xfe] %vm467, %v465
      %vm469 = vcmask 122880
      %470 = vst.msk [vmem:[%s310 + $0x7] sm:$0x1] %vm469, %v466
      %p471 = scmp.lt.s32.totalorder %s21, 1
      %s472 = scalar_select %p471, %s21, 1
      %p473 = scmp.lt.s32.totalorder %s22, 2
      %s474 = scalar_select %p473, %s22, 2
      %s475 = smul.addr %s472, 3
      %s476 = sadd.s32 %s474, %s475
      %s477 = smul.addr %s476, 8
      %s478 = scalar_lea.vmem %s6, %s477
      // Predicated region
      $region45: #{tpu_custom_call.1} parent=43 // pred_check
        %p479 = pneg %p189
      $region46: #{tpu_custom_call.1} parent=43 // pred_check_branch
        %481 = sbr.rel (%p479) target = $region48
      $region47: #{tpu_custom_call.1} parent=43 // pred_region
        _
      $region48: #{tpu_custom_call.1} parent=43 // pred_fallthru
        _
    $region44: #{tpu_custom_call.1} parent=5 // pred_fallthru
      _
    %p482 = scmp.le.s32.totalorder 2, %s12
    // Predicated region
    $region49: #{tpu_custom_call.1} parent=5 // pred_check
      %p483 = pneg %p482
    $region50: #{tpu_custom_call.1} parent=5 // pred_check_branch
      %485 = sbr.rel (%p483) target = $region52
    $region51: #{tpu_custom_call.1} parent=5 // pred_region
      %s486 = ssub.s32 %s12, 2
      // Predicated region
      $region53: #{tpu_custom_call.1} parent=51 // pred_check
        %p487 = pneg %p195
      $region54: #{tpu_custom_call.1} parent=51 // pred_check_branch
        %489 = sbr.rel (%p487) target = $region56
      $region55: #{tpu_custom_call.1} parent=51 // pred_region
        %p490 = scmp.lt.s32.totalorder %s23, 1
        %s491 = scalar_select %p490, %s23, 1
        %p492 = scmp.lt.s32.totalorder %s24, 2
        %s493 = scalar_select %p492, %s24, 2
        %s494 = smul.addr %s491, 3
        %s495 = sadd.s32 %s493, %s494
        %s496 = smul.addr %s495, 8
        %s497 = scalar_lea.vmem %s6, %s496
      $region56: #{tpu_custom_call.1} parent=51 // pred_fallthru
        _
    $region52: #{tpu_custom_call.1} parent=5 // pred_fallthru
      _
  $region6: #{tpu_custom_call.1} parent=0 // loop_footer
    %s16 = sadd.s32 1, %s12
  $region7: #{tpu_custom_call.1} parent=0 // loop_footer_branch
    %11 = sbr.rel target = $region3
  $region8: #{tpu_custom_call.1} parent=0 // loop_exit
    _

</llo_original>
